<compile_context>
chip_gen: v7x
topology: tpu7x:2x2x1
jax: 0.10.0
libtpu: 0.0.40
codegen_flags: <defaults>
</compile_context>

<pallas_src>
import jax
import jax.numpy as jnp
from jax.experimental import pallas as pl
from jax.experimental.pallas import tpu as pltpu

_LANE = 128
_SUBLANE = 8
_STEP_ELEMS = 512 * 1024     # target useful elems / input / grid step (~2 MiB f32)
_MAX_BUF_ELEMS = 640 * 1024  # cap on (sublane-padded) elems / input / pipeline buffer (~2.5 MiB f32)


def _round_up(x, m):
    return ((x + m - 1) // m) * m


def _make_kernel(n_cols, tile_n, nj_per_split, needs_mask):
    """Kernel accumulating per-image iand / union directly into the output blocks."""

    def kernel(pred_ref, target_ref, iand_ref, union_ref):
        c = pl.program_id(0)          # spatial-split index (v7x megacore)
        j = pl.program_id(2)          # spatial tile index within the split

        @pl.when(j == 0)
        def _init():
            iand_ref[...] = jnp.zeros_like(iand_ref)
            union_ref[...] = jnp.zeros_like(union_ref)

        p = pred_ref[...].astype(jnp.float32)    # (tb, tile_n)
        t = target_ref[...].astype(jnp.float32)  # (tb, tile_n)

        if needs_mask:
            # Zero out columns past the true width N (boundary tiles carry
            # unspecified data; jnp.where neutralizes even NaN garbage).
            col0 = (c * nj_per_split + j) * tile_n
            col = jax.lax.broadcasted_iota(jnp.int32, p.shape, 1) + col0
            valid = col < n_cols
            p = jnp.where(valid, p, 0.0)
            t = jnp.where(valid, t, 0.0)

        iand_ref[...] += jnp.sum(t * p, axis=-1, keepdims=True)
        union_ref[...] += jnp.sum(t + p, axis=-1, keepdims=True)

    return kernel


def iou_loss(pred, target):
    """Pallas equivalent of IOU().forward(pred, target). Returns a scalar."""
    assert pred.shape == target.shape
    B = int(pred.shape[0])
    N = 1
    for d in pred.shape[1:]:
        N *= int(d)

    # Lane-dense flatten: (B, C, H, W) -> (B, N).  Pure metadata, no HBM rewrite.
    p2 = pred.reshape(B, N)
    t2 = target.reshape(B, N)

    n_lane = _round_up(N, _LANE)

    # --- rows per block (sublane-dense whenever possible) ---
    tb = B if B <= _SUBLANE else _SUBLANE
    pad_tb = _round_up(tb, _SUBLANE)  # VMEM footprint pads sublanes to 8

    # --- columns per block: near the step target, under the buffer cap,
    #     sized so the per-row pad is at most one lane-block ---
    col_cap = max(_LANE, (_MAX_BUF_ELEMS // pad_tb) // _LANE * _LANE)
    col_tgt = max(_LANE, (_STEP_ELEMS // tb) // _LANE * _LANE)
    col_budget = min(col_cap, col_tgt)
    nj = -(-n_lane // col_budget)
    tile_n = _round_up(-(-n_lane // nj), _LANE)
    nj = -(-n_lane // tile_n)

    # Grow the batch block from the remaining budget (amortizes the ~0.35us/step
    # grid overhead for many-small-image batches), but keep >= 2 batch blocks.
    if B > _SUBLANE:
        rows_fit = max(_SUBLANE, (_STEP_ELEMS // tile_n) // _SUBLANE * _SUBLANE)
        tb = min(rows_fit, max(_SUBLANE, _round_up(-(-B // 2), _SUBLANE)))

    grid_b = -(-B // tb)

    # v7x megacore: ensure >= 2 blocks on a "parallel" grid axis when possible.
    n_split = 2 if (grid_b < 2 and nj >= 2) else 1
    nj_per_split = -(-nj // n_split)
    needs_mask = (n_split * nj_per_split * tile_n) != N
    nj_last = nj - 1

    grid = (n_split, grid_b, nj_per_split)
    kernel = _make_kernel(N, tile_n, nj_per_split, needs_mask)

    def in_map(c, i, j):
        # Clamp so the (possibly) extra tile of an uneven split stays in-bounds;
        # its contribution is fully masked in-kernel.
        return (i, jnp.minimum(c * nj_per_split + j, nj_last))

    def out_map(c, i, j):
        return (c, i, 0)

    iand_parts, union_parts = pl.pallas_call(
        kernel,
        out_shape=(
            jax.ShapeDtypeStruct((n_split, B, 1), jnp.float32),
            jax.ShapeDtypeStruct((n_split, B, 1), jnp.float32),
        ),
        grid_spec=pltpu.PrefetchScalarGridSpec(
            num_scalar_prefetch=0,
            grid=grid,
            in_specs=[
                pl.BlockSpec((tb, tile_n), in_map),
                pl.BlockSpec((tb, tile_n), in_map),
            ],
            out_specs=[
                pl.BlockSpec((None, tb, 1), out_map),
                pl.BlockSpec((None, tb, 1), out_map),
            ],
        ),
        compiler_params=pltpu.CompilerParams(
            dimension_semantics=("parallel", "parallel", "arbitrary"),
        ),
    )(p2, t2)

    # Combine split partials and compute the per-image loss + batch mean (O(B)).
    iand = jnp.sum(iand_parts[..., 0], axis=0)    # (B,)
    union = jnp.sum(union_parts[..., 0], axis=0)  # (B,)
    ior = union - iand
    # NOTE: matches PyTorch reference (0/0 -> NaN if both masks are empty).
    return jnp.mean(1.0 - iand / ior)


def _iou_ref(pred, target):
    # Pure-JAX reference mirroring the PyTorch loop.
    b = pred.shape[0]
    total = 0.0
    for i in range(b):
        iand = jnp.sum(target[i] * pred[i])
        ior = jnp.sum(target[i]) + jnp.sum(pred[i]) - iand
        total = total + (1.0 - iand / ior)
    return total / b


if __name__ == "__main__":
    key = jax.random.PRNGKey(0)
    k1, k2, k3, k4 = jax.random.split(key, 4)

    # Case 1: canonical small shape, f32 inputs (single tile, no masking).
    B, C, H, W = 2, 4, 16, 16
    pred = jax.nn.sigmoid(jax.random.normal(k1, (B, C, H, W), dtype=jnp.float32))
    target = (jax.random.uniform(k2, (B, C, H, W)) > 0.5).astype(jnp.float32)
    out = jax.block_until_ready(iou_loss(pred, target))
    ref = _iou_ref(pred, target)
    assert jnp.allclose(out, ref, rtol=1e-5, atol=1e-5), (out, ref)

    # Case 2: ragged N (not a multiple of 128) + narrow input dtypes
    #         (exercises the in-kernel tail mask and the bf16/int8 fast path).
    pred2 = jax.nn.sigmoid(jax.random.normal(k3, (3, 3, 7, 5))).astype(jnp.bfloat16)
    target2 = (jax.random.uniform(k4, (3, 3, 7, 5)) > 0.5).astype(jnp.int8)
    out2 = jax.block_until_ready(iou_loss(pred2, target2))
    ref2 = _iou_ref(pred2.astype(jnp.float32), target2.astype(jnp.float32))
    assert jnp.allclose(out2, ref2, rtol=1e-4, atol=1e-4), (out2, ref2)

    # Case 3: small batch, larger image -> exercises the 2-way spatial split.
    k5, k6 = jax.random.split(k1)
    pred3 = jax.nn.sigmoid(jax.random.normal(k5, (2, 4, 160, 160), dtype=jnp.float32))
    target3 = (jax.random.uniform(k6, (2, 4, 160, 160)) > 0.5).astype(jnp.float32)
    out3 = jax.block_until_ready(iou_loss(pred3, target3))
    ref3 = _iou_ref(pred3, target3)
    assert jnp.allclose(out3, ref3, rtol=1e-4, atol=1e-4), (out3, ref3)

    print("KERNEL_OK")
</pallas_src>

<mosaic_0001>
module attributes {stable_mosaic.version = 11 : i64} {
  func.func @kernel(%arg0: i32, %arg1: i32, %arg2: i32, %arg3: memref<2x1024xf32, #tpu.memory_space<vmem>>, %arg4: memref<2x1024xf32, #tpu.memory_space<vmem>>, %arg5: memref<1x2x1xf32, #tpu.memory_space<vmem>>, %arg6: memref<1x2x1xf32, #tpu.memory_space<vmem>>) attributes {dimension_semantics = [#tpu.dimension_semantics<parallel>, #tpu.dimension_semantics<parallel>, #tpu.dimension_semantics<arbitrary>], iteration_bounds = array<i64: 1, 1, 1>, scalar_prefetch = 0 : i64, scratch_operands = 0 : i64, tpu.core_type = #tpu.core_type<tc>, window_params = [{transform_indices = @transform_0, window_bounds = array<i64: 2, 1024>}, {transform_indices = @transform_1, window_bounds = array<i64: 2, 1024>}, {transform_indices = @transform_2, window_bounds = array<i64: 1, 2, 1>}, {transform_indices = @transform_3, window_bounds = array<i64: 1, 2, 1>}]} {
    %c0_i32 = arith.constant 0 : i32
    %0 = arith.cmpi eq, %arg2, %c0_i32 : i32
    %1 = arith.extui %0 : i1 to i32
    %c0_i32_0 = arith.constant 0 : i32
    %2 = arith.cmpi ne, %1, %c0_i32_0 : i32
    scf.if %2 {
      %cst_17 = arith.constant 0.000000e+00 : f32
      %23 = vector.broadcast %cst_17 : f32 to vector<2x1xf32>
      %c0_18 = arith.constant 0 : index
      %c0_19 = arith.constant 0 : index
      %c0_20 = arith.constant 0 : index
      %24 = vector.load %arg5[%c0_18, %c0_19, %c0_20] : memref<1x2x1xf32, #tpu.memory_space<vmem>>, vector<1x2x1xf32>
      %25 = vector.shape_cast %24 : vector<1x2x1xf32> to vector<2x1xf32>
      %26 = vector.shape_cast %23 : vector<2x1xf32> to vector<1x2x1xf32>
      tpu.vector_store %arg5[%c0_18, %c0_19, %c0_20], %26 {strides = array<i32>} : memref<1x2x1xf32, #tpu.memory_space<vmem>>, vector<1x2x1xf32>,
      %cst_21 = arith.constant 0.000000e+00 : f32
      %27 = vector.broadcast %cst_21 : f32 to vector<2x1xf32>
      %c0_22 = arith.constant 0 : index
      %c0_23 = arith.constant 0 : index
      %c0_24 = arith.constant 0 : index
      %28 = vector.load %arg6[%c0_22, %c0_23, %c0_24] : memref<1x2x1xf32, #tpu.memory_space<vmem>>, vector<1x2x1xf32>
      %29 = vector.shape_cast %28 : vector<1x2x1xf32> to vector<2x1xf32>
      %30 = vector.shape_cast %27 : vector<2x1xf32> to vector<1x2x1xf32>
      tpu.vector_store %arg6[%c0_22, %c0_23, %c0_24], %30 {strides = array<i32>} : memref<1x2x1xf32, #tpu.memory_space<vmem>>, vector<1x2x1xf32>,
    } else {
    }
    %c0 = arith.constant 0 : index
    %c0_1 = arith.constant 0 : index
    %3 = vector.load %arg3[%c0, %c0_1] : memref<2x1024xf32, #tpu.memory_space<vmem>>, vector<2x1024xf32>
    %c0_2 = arith.constant 0 : index
    %c0_3 = arith.constant 0 : index
    %4 = vector.load %arg4[%c0_2, %c0_3] : memref<2x1024xf32, #tpu.memory_space<vmem>>, vector<2x1024xf32>
    %c0_4 = arith.constant 0 : index
    %c0_5 = arith.constant 0 : index
    %c0_6 = arith.constant 0 : index
    %5 = vector.load %arg5[%c0_4, %c0_5, %c0_6] : memref<1x2x1xf32, #tpu.memory_space<vmem>>, vector<1x2x1xf32>
    %6 = vector.shape_cast %5 : vector<1x2x1xf32> to vector<2x1xf32>
    %7 = arith.mulf %4, %3 : vector<2x1024xf32>
    %cst = arith.constant dense<0.000000e+00> : vector<2xf32>
    %8 = vector.multi_reduction <add>, %7, %cst [1] : vector<2x1024xf32> to vector<2xf32>
    %9 = vector.shape_cast %8 : vector<2xf32> to vector<2x1xf32>
    %10 = arith.addf %6, %9 : vector<2x1xf32>
    %c0_7 = arith.constant 0 : index
    %c0_8 = arith.constant 0 : index
    %c0_9 = arith.constant 0 : index
    %11 = vector.load %arg5[%c0_7, %c0_8, %c0_9] : memref<1x2x1xf32, #tpu.memory_space<vmem>>, vector<1x2x1xf32>
    %12 = vector.shape_cast %11 : vector<1x2x1xf32> to vector<2x1xf32>
    %13 = vector.shape_cast %10 : vector<2x1xf32> to vector<1x2x1xf32>
    tpu.vector_store %arg5[%c0_7, %c0_8, %c0_9], %13 {strides = array<i32>} : memref<1x2x1xf32, #tpu.memory_space<vmem>>, vector<1x2x1xf32>,
    %c0_10 = arith.constant 0 : index
    %c0_11 = arith.constant 0 : index
    %c0_12 = arith.constant 0 : index
    %14 = vector.load %arg6[%c0_10, %c0_11, %c0_12] : memref<1x2x1xf32, #tpu.memory_space<vmem>>, vector<1x2x1xf32>
    %15 = vector.shape_cast %14 : vector<1x2x1xf32> to vector<2x1xf32>
    %16 = arith.addf %4, %3 : vector<2x1024xf32>
    %cst_13 = arith.constant dense<0.000000e+00> : vector<2xf32>
    %17 = vector.multi_reduction <add>, %16, %cst_13 [1] : vector<2x1024xf32> to vector<2xf32>
    %18 = vector.shape_cast %17 : vector<2xf32> to vector<2x1xf32>
    %19 = arith.addf %15, %18 : vector<2x1xf32>
    %c0_14 = arith.constant 0 : index
    %c0_15 = arith.constant 0 : index
    %c0_16 = arith.constant 0 : index
    %20 = vector.load %arg6[%c0_14, %c0_15, %c0_16] : memref<1x2x1xf32, #tpu.memory_space<vmem>>, vector<1x2x1xf32>
    %21 = vector.shape_cast %20 : vector<1x2x1xf32> to vector<2x1xf32>
    %22 = vector.shape_cast %19 : vector<2x1xf32> to vector<1x2x1xf32>
    tpu.vector_store %arg6[%c0_14, %c0_15, %c0_16], %22 {strides = array<i32>} : memref<1x2x1xf32, #tpu.memory_space<vmem>>, vector<1x2x1xf32>,
    return
  }
  func.func @transform_0(%arg0: i32, %arg1: i32, %arg2: i32) -> (i32, i32) {
    %c1_i32 = arith.constant 1 : i32
    %0 = arith.muli %arg0, %c1_i32 : i32
    %1 = arith.addi %0, %arg2 : i32
    %c0_i32 = arith.constant 0 : i32
    %2 = arith.minsi %1, %c0_i32 : i32
    %c0_i32_0 = arith.constant 0 : i32
    return %arg1, %2 : i32, i32
  }
  func.func @transform_1(%arg0: i32, %arg1: i32, %arg2: i32) -> (i32, i32) {
    %c1_i32 = arith.constant 1 : i32
    %0 = arith.muli %arg0, %c1_i32 : i32
    %1 = arith.addi %0, %arg2 : i32
    %c0_i32 = arith.constant 0 : i32
    %2 = arith.minsi %1, %c0_i32 : i32
    %c0_i32_0 = arith.constant 0 : i32
    return %arg1, %2 : i32, i32
  }
  func.func @transform_2(%arg0: i32, %arg1: i32, %arg2: i32) -> (i32, i32, i32) {
    %c0_i32 = arith.constant 0 : i32
    %c0_i32_0 = arith.constant 0 : i32
    return %arg0, %arg1, %c0_i32 : i32, i32, i32
  }
  func.func @transform_3(%arg0: i32, %arg1: i32, %arg2: i32) -> (i32, i32, i32) {
    %c0_i32 = arith.constant 0 : i32
    %c0_i32_0 = arith.constant 0 : i32
    return %arg0, %arg1, %c0_i32 : i32, i32, i32
  }
}

</mosaic_0001>

<llo_original>
// kernel: tpu_custom_call.1
$region0: #{tpu_custom_call.1}
  #allocation0 [shape = 'u32[]', space=smem, size = 0x4, offset = 0x4, fixed_abs, tag = 'smem constant byte address 0x4 - core index']
  #allocation1 [shape = 'u32[144,128]{1,0:T(1,128)}', space=vmem, size = 0x12000, scoped, tag = 'internal scratch']
  %s0 = inlined_call_operand.hbm [shape: f32[2,1024], index: 0, kind: input, shape index: {}]
  %s1 = inlined_call_operand.hbm [shape: f32[2,1024], index: 1, kind: input, shape index: {}]
  %s2 = inlined_call_operand.vmem [shape: f32[1,2,1], index: 2, kind: output, shape index: {0}]
  %s3 = inlined_call_operand.vmem [shape: f32[1,2,1], index: 3, kind: output, shape index: {1}]
  %4 = xla_tuple %s2, %s3
  %s5 = sld [smem:[#allocation0]]
  $region38: #{tpu_custom_call.1} parent=0
    _
  %s7 = ssub.s32 1, %s5
  %s8 = scalar_select 0, %s7, %s5
  $region1: #{tpu_custom_call.1} parent=0
    #allocation2 [shape = 'u8[8192]{0}', space=vmem, size = 0x2000, scoped, tag = 'input window, operand 0, single buffered']
    #allocation3 [shape = 's32[1]{0}', space=sflag, size = 0x4, scoped, tag = 'scoped memory for tpu_custom_call.1']
    #allocation4 [shape = 'u8[8192]{0}', space=vmem, size = 0x2000, scoped, tag = 'input window, operand 1, single buffered']
    #allocation5 [shape = 's32[1]{0}', space=sflag, size = 0x4, scoped, tag = 'scoped memory for tpu_custom_call.1']
    %9 = vsyncpa [#allocation3], 0
    %10 = vsyncpa [#allocation5], 0
    // Predicated region
    $region2: #{tpu_custom_call.1} parent=1 // pred_check
      _
    $region3: #{tpu_custom_call.1} parent=1 // pred_check_branch
      %12 = sbr.rel (0) target = $region5
    $region4: #{tpu_custom_call.1} parent=1 // pred_region
      %s13 = sadd.s32 0, 0
      %p14 = scmp.lt.s32.totalorder %s13, 0
      %s15 = scalar_select %p14, %s13, 0
      %s16 = smul.u32 8, %s15
      %s18 = ssub.s32 256, 256
      %19 = vsyncadd [#allocation3], %s18
      %s20 = smul.addr %s16, 32
      %s21 = scalar_lea.hbm %s0, %s20
      %s23 = sshll.u32 [#allocation2], 4
      %s24 = int_to_ptr.vmem [resolvable:$true] %s23
      %26 = dma.hbm_to_vmem [thread:$0]  %s21, 256, %s24, [#allocation3]
    $region5: #{tpu_custom_call.1} parent=1 // pred_fallthru
      _
    // Predicated region
    $region6: #{tpu_custom_call.1} parent=1 // pred_check
      _
    $region7: #{tpu_custom_call.1} parent=1 // pred_check_branch
      %28 = sbr.rel (0) target = $region9
    $region8: #{tpu_custom_call.1} parent=1 // pred_region
      %s29 = sadd.s32 0, 0
      %p30 = scmp.lt.s32.totalorder %s29, 0
      %s31 = scalar_select %p30, %s29, 0
      %s32 = smul.u32 8, %s31
      %s34 = ssub.s32 256, 256
      %35 = vsyncadd [#allocation5], %s34
      %s36 = smul.addr %s32, 32
      %s37 = scalar_lea.hbm %s1, %s36
      %s39 = sshll.u32 [#allocation4], 4
      %s40 = int_to_ptr.vmem [resolvable:$true] %s39
      %42 = dma.hbm_to_vmem [thread:$0]  %s37, 256, %s40, [#allocation5]
    $region9: #{tpu_custom_call.1} parent=1 // pred_fallthru
      _
    // Predicated region
    $region10: #{tpu_custom_call.1} parent=1 // pred_check
      _
    $region11: #{tpu_custom_call.1} parent=1 // pred_check_branch
      %44 = sbr.rel (0) target = $region13
    $region12: #{tpu_custom_call.1} parent=1 // pred_region
      %45 = dma.done [#allocation3], 256
    $region13: #{tpu_custom_call.1} parent=1 // pred_fallthru
      _
    // Predicated region
    $region14: #{tpu_custom_call.1} parent=1 // pred_check
      _
    $region15: #{tpu_custom_call.1} parent=1 // pred_check_branch
      %47 = sbr.rel (0) target = $region17
    $region16: #{tpu_custom_call.1} parent=1 // pred_region
      %48 = dma.done [#allocation5], 256
    $region17: #{tpu_custom_call.1} parent=1 // pred_fallthru
      _
    %s49 = sadd.s32 0, 0
    %p50 = scmp.lt.s32.totalorder %s49, 0
    %s51 = scalar_select %p50, %s49, 0
    %s52 = smul.u32 8, %s51
    %s53 = sadd.s32 0, 0
    %p54 = scmp.lt.s32.totalorder %s53, 0
    %s55 = scalar_select %p54, %s53, 0
    %s56 = smul.u32 8, %s55
    %p57 = scmp.eq.s32.totalorder 0, 0
    // Predicated region
    $region18: #{tpu_custom_call.1} parent=1 // pred_check
      %p58 = pneg %p57
    $region19: #{tpu_custom_call.1} parent=1 // pred_check_branch
      %60 = sbr.rel (%p58) target = $region21
    $region20: #{tpu_custom_call.1} parent=1 // pred_region
      %vm61 = vcmask 1024
      %62 = vst.msk [vmem:[%s2] sm:$0x3] %vm61, 0.0
      %63 = vst.msk [vmem:[%s3] sm:$0x3] %vm61, 0.0
    $region21: #{tpu_custom_call.1} parent=1 // pred_fallthru
      _
    %v64 = vld [vmem:[#allocation2] sm:$0xff]
    %v65 = vld [vmem:[#allocation2 + $0x8] sm:$0xff]
    %v66 = vld [vmem:[#allocation4] sm:$0xff]
    %v67 = vld [vmem:[#allocation4 + $0x8] sm:$0xff]
    %v68 = vld [vmem:[%s2] sm:$0x3]
    %v69 = vmul.f32 %v66, %v64
    %v70 = vmul.f32 %v67, %v65
    %v73 = vcombine.high %v69, %v69
    %v75 = vunpack.c.l.s4 1983009808
    %v76 = vunpack.c.0.s8 %v75
    %v77 = vlaneseq
    %v78 = vshrl.u32 %v77, 7
    %v79 = vsub.s32 %v76, %v78
    %v80 = vrot.slane %v69, %v79
    %v82 = vunpack.c.l.s4 1983009808
    %v83 = vunpack.c.0.s8 %v82
    %v84 = vlaneseq
    %v85 = vshrl.u32 %v84, 7
    %v86 = vsub.s32 %v83, %v85
    %v87 = vrot.slane %v73, %v86
    %v88 = vcombine.high %v80, %v80
    %v89 = vcombine.high %v87, %v87
    %v90 = vcombine.high %v70, %v70
    %v92 = vunpack.c.l.s4 1983009808
    %v93 = vunpack.c.0.s8 %v92
    %v94 = vlaneseq
    %v95 = vshrl.u32 %v94, 7
    %v96 = vsub.s32 %v93, %v95
    %v97 = vrot.slane %v70, %v96
    %v99 = vunpack.c.l.s4 1983009808
    %v100 = vunpack.c.0.s8 %v99
    %v101 = vlaneseq
    %v102 = vshrl.u32 %v101, 7
    %v103 = vsub.s32 %v100, %v102
    %v104 = vrot.slane %v90, %v103
    %v105 = vcombine.high %v97, %v97
    %v106 = vcombine.high %v104, %v104
    %vm115 = vcmask 1041408
    %v116 = vsel %vm115, %v80, 0.0
    %v117 = vsel %vm115, %v88, 0.0
    %v118 = vadd.f32 %v116, %v117
    %v119 = vsel %vm115, %v87, 0.0
    %v120 = vadd.f32 %v118, %v119
    %v121 = vsel %vm115, %v89, 0.0
    %v122 = vadd.f32 %v120, %v121
    %v123 = vsel %vm115, %v97, 0.0
    %v124 = vadd.f32 %v122, %v123
    %v125 = vsel %vm115, %v105, 0.0
    %v126 = vadd.f32 %v124, %v125
    %v127 = vsel %vm115, %v104, 0.0
    %v128 = vadd.f32 %v126, %v127
    %v129 = vsel %vm115, %v106, 0.0
    %v130 = vadd.f32 %v128, %v129
    %131 = vadd.xlane.f32.xlu0 %v130
    %v132 = vpop.xlane.xlu0 %131
    %v133 = vadd.f32 %v68, %v132
    %vm134 = vcmask 1024
    %135 = vst.msk [vmem:[%s2] sm:$0x3] %vm134, %v133
    %v136 = vld [vmem:[%s3] sm:$0x3]
    %v137 = vadd.f32 %v66, %v64
    %v138 = vadd.f32 %v67, %v65
    %v141 = vcombine.high %v137, %v137
    %v143 = vunpack.c.l.s4 1983009808
    %v144 = vunpack.c.0.s8 %v143
    %v145 = vlaneseq
    %v146 = vshrl.u32 %v145, 7
    %v147 = vsub.s32 %v144, %v146
    %v148 = vrot.slane %v137, %v147
    %v150 = vunpack.c.l.s4 1983009808
    %v151 = vunpack.c.0.s8 %v150
    %v152 = vlaneseq
    %v153 = vshrl.u32 %v152, 7
    %v154 = vsub.s32 %v151, %v153
    %v155 = vrot.slane %v141, %v154
    %v156 = vcombine.high %v148, %v148
    %v157 = vcombine.high %v155, %v155
    %v158 = vcombine.high %v138, %v138
    %v160 = vunpack.c.l.s4 1983009808
    %v161 = vunpack.c.0.s8 %v160
    %v162 = vlaneseq
    %v163 = vshrl.u32 %v162, 7
    %v164 = vsub.s32 %v161, %v163
    %v165 = vrot.slane %v138, %v164
    %v167 = vunpack.c.l.s4 1983009808
    %v168 = vunpack.c.0.s8 %v167
    %v169 = vlaneseq
    %v170 = vshrl.u32 %v169, 7
    %v171 = vsub.s32 %v168, %v170
    %v172 = vrot.slane %v158, %v171
    %v173 = vcombine.high %v165, %v165
    %v174 = vcombine.high %v172, %v172
    %v183 = vsel %vm115, %v148, 0.0
    %v184 = vsel %vm115, %v156, 0.0
    %v185 = vadd.f32 %v183, %v184
    %v186 = vsel %vm115, %v155, 0.0
    %v187 = vadd.f32 %v185, %v186
    %v188 = vsel %vm115, %v157, 0.0
    %v189 = vadd.f32 %v187, %v188
    %v190 = vsel %vm115, %v165, 0.0
    %v191 = vadd.f32 %v189, %v190
    %v192 = vsel %vm115, %v173, 0.0
    %v193 = vadd.f32 %v191, %v192
    %v194 = vsel %vm115, %v172, 0.0
    %v195 = vadd.f32 %v193, %v194
    %v196 = vsel %vm115, %v174, 0.0
    %v197 = vadd.f32 %v195, %v196
    %198 = vadd.xlane.f32.xlu0 %v197
    %v199 = vpop.xlane.xlu0 %198
    %v200 = vadd.f32 %v136, %v199
    %201 = vst.msk [vmem:[%s3] sm:$0x3] %vm134, %v200
    // Predicated region
    $region22: #{tpu_custom_call.1} parent=1 // pred_check
      _
    $region23: #{tpu_custom_call.1} parent=1 // pred_check_branch
      %203 = sbr.rel (0) target = $region25
    $region24: #{tpu_custom_call.1} parent=1 // pred_region
      _
    $region25: #{tpu_custom_call.1} parent=1 // pred_fallthru
      _
    // Predicated region
    $region26: #{tpu_custom_call.1} parent=1 // pred_check
      _
    $region27: #{tpu_custom_call.1} parent=1 // pred_check_branch
      %205 = sbr.rel (0) target = $region29
    $region28: #{tpu_custom_call.1} parent=1 // pred_region
      _
    $region29: #{tpu_custom_call.1} parent=1 // pred_fallthru
      _
    // Predicated region
    $region30: #{tpu_custom_call.1} parent=1 // pred_check
      _
    $region31: #{tpu_custom_call.1} parent=1 // pred_check_branch
      %207 = sbr.rel (0) target = $region33
    $region32: #{tpu_custom_call.1} parent=1 // pred_region
      _
    $region33: #{tpu_custom_call.1} parent=1 // pred_fallthru
      _
    // Predicated region
    $region34: #{tpu_custom_call.1} parent=1 // pred_check
      _
    $region35: #{tpu_custom_call.1} parent=1 // pred_check_branch
      %209 = sbr.rel (0) target = $region37
    $region36: #{tpu_custom_call.1} parent=1 // pred_region
      _
    $region37: #{tpu_custom_call.1} parent=1 // pred_fallthru
      _
    %210 = vsyncpa [#allocation3], 1
    %211 = vsyncpa [#allocation5], 1

</llo_original>
